<compile_context>
chip_gen: v5e
topology: v5e:2x2
jax: 0.10.0
libtpu: 0.0.40
codegen_flags: <defaults>
</compile_context>

<pallas_src>
from functools import partial

import jax
import jax.numpy as jnp
from jax import lax
from jax.experimental import pallas as pl
from jax.experimental.pallas import tpu as pltpu


def _round_up(x, m):
    return (x + m - 1) // m * m


# ----------------------------------------------------------------------------
# Linear (matmul + bias), optionally with a fused residual add.
# ----------------------------------------------------------------------------
def _linear_kernel(x_ref, w_ref, b_ref, o_ref):
    acc = jnp.dot(x_ref[...], w_ref[...], preferred_element_type=jnp.float32)
    acc = acc + b_ref[...]
    o_ref[...] = acc.astype(o_ref.dtype)


def _linear_residual_kernel(x_ref, w_ref, b_ref, r_ref, o_ref):
    acc = jnp.dot(x_ref[...], w_ref[...], preferred_element_type=jnp.float32)
    acc = acc + b_ref[...] + r_ref[...].astype(jnp.float32)
    o_ref[...] = acc.astype(o_ref.dtype)


def pallas_linear(x2d, w, b, residual=None, *, tm=256):
    """y = x2d @ w + b (+ residual).  x2d: [M, K], w: [K, N], b: [N]."""
    M, K = x2d.shape
    N = w.shape[1]
    tm_eff = min(tm, _round_up(M, 8))          # sublane-aligned row tile
    Mp = _round_up(M, tm_eff)
    if Mp != M:
        x2d = jnp.pad(x2d, ((0, Mp - M), (0, 0)))
        if residual is not None:
            residual = jnp.pad(residual, ((0, Mp - M), (0, 0)))
    b2d = b.reshape(1, N)

    x_spec = pl.BlockSpec((tm_eff, K), lambda i: (i, 0))
    w_spec = pl.BlockSpec((K, N), lambda i: (0, 0))     # resident weights
    b_spec = pl.BlockSpec((1, N), lambda i: (0, 0))
    o_spec = pl.BlockSpec((tm_eff, N), lambda i: (i, 0))
    cparams = pltpu.CompilerParams(dimension_semantics=("parallel",))

    if residual is None:
        out = pl.pallas_call(
            _linear_kernel,
            out_shape=jax.ShapeDtypeStruct((Mp, N), x2d.dtype),
            grid=(Mp // tm_eff,),
            in_specs=[x_spec, w_spec, b_spec],
            out_specs=o_spec,
            compiler_params=cparams,
        )(x2d, w, b2d)
    else:
        r_spec = pl.BlockSpec((tm_eff, N), lambda i: (i, 0))
        out = pl.pallas_call(
            _linear_residual_kernel,
            out_shape=jax.ShapeDtypeStruct((Mp, N), x2d.dtype),
            grid=(Mp // tm_eff,),
            in_specs=[x_spec, w_spec, b_spec, r_spec],
            out_specs=o_spec,
            compiler_params=cparams,
        )(x2d, w, b2d, residual)
    return out[:M]


# ----------------------------------------------------------------------------
# LayerNorm (row-wise), optionally fused with the residual add.
# ----------------------------------------------------------------------------
def _ln_core(x, g, b):
    mean = jnp.mean(x, axis=-1, keepdims=True)
    xc = x - mean
    var = jnp.mean(xc * xc, axis=-1, keepdims=True)
    inv = lax.rsqrt(var + 1e-5)                 # PyTorch LayerNorm eps
    return xc * inv * g + b


def _layernorm_kernel(x_ref, g_ref, b_ref, o_ref):
    x = x_ref[...].astype(jnp.float32)
    o_ref[...] = _ln_core(x, g_ref[...], b_ref[...]).astype(o_ref.dtype)


def _layernorm_residual_kernel(x_ref, g_ref, b_ref, o_ref):
    # FeedForwardBlock bug: its forward() returns the input, so the whole MLP
    # is dead compute.  The encoder block's second half is exactly LN(x) + x,
    # fused here in one pass (no dead matmuls, no extra HBM traffic).
    x = x_ref[...].astype(jnp.float32)
    o_ref[...] = (_ln_core(x, g_ref[...], b_ref[...]) + x).astype(o_ref.dtype)


def pallas_layernorm(x2d, gamma, beta, *, residual=False, tm=256):
    M, E = x2d.shape
    tm_eff = min(tm, _round_up(M, 8))
    Mp = _round_up(M, tm_eff)
    xp = jnp.pad(x2d, ((0, Mp - M), (0, 0))) if Mp != M else x2d
    g2d, b2d = gamma.reshape(1, E), beta.reshape(1, E)
    kern = _layernorm_residual_kernel if residual else _layernorm_kernel
    out = pl.pallas_call(
        kern,
        out_shape=jax.ShapeDtypeStruct((Mp, E), x2d.dtype),
        grid=(Mp // tm_eff,),
        in_specs=[pl.BlockSpec((tm_eff, E), lambda i: (i, 0)),
                  pl.BlockSpec((1, E), lambda i: (0, 0)),
                  pl.BlockSpec((1, E), lambda i: (0, 0))],
        out_specs=pl.BlockSpec((tm_eff, E), lambda i: (i, 0)),
        compiler_params=pltpu.CompilerParams(dimension_semantics=("parallel",)),
    )(xp, g2d, b2d)
    return out[:M]


# ----------------------------------------------------------------------------
# Scaled-dot-product attention, one (batch, head) per grid step.
# ----------------------------------------------------------------------------
def _attention_kernel(q_ref, k_ref, v_ref, o_ref, *, scaling, true_n):
    q = q_ref[0].astype(jnp.float32)                         # [Np, d]
    k = k_ref[0].astype(jnp.float32)
    v = v_ref[0].astype(jnp.float32)
    # scores = q @ k^T  (contract on the head dim, no explicit transpose)
    s = lax.dot_general(q, k, (((1,), (1,)), ((), ())),
                        preferred_element_type=jnp.float32) * scaling
    # Mask padded key columns, then numerically-stable softmax.
    col = lax.broadcasted_iota(jnp.int32, s.shape, 1)
    s = jnp.where(col < true_n, s, -1e30)
    m = jnp.max(s, axis=-1, keepdims=True)
    p = jnp.exp(s - m)
    p = p / jnp.sum(p, axis=-1, keepdims=True)
    o = jnp.dot(p, v, preferred_element_type=jnp.float32)    # [Np, d]
    o_ref[0] = o.astype(o_ref.dtype)


def pallas_attention(q, k, v, *, scaling):
    """q, k, v: [B*H, n, d] -> [B*H, n, d]."""
    BH, n, d = q.shape
    n_pad = _round_up(n, 8)
    if n_pad != n:
        pad = ((0, 0), (0, n_pad - n), (0, 0))
        q, k, v = jnp.pad(q, pad), jnp.pad(k, pad), jnp.pad(v, pad)
    spec = pl.BlockSpec((1, n_pad, d), lambda i: (i, 0, 0))
    out = pl.pallas_call(
        partial(_attention_kernel, scaling=scaling, true_n=n),
        out_shape=jax.ShapeDtypeStruct((BH, n_pad, d), q.dtype),
        grid=(BH,),
        in_specs=[spec, spec, spec],
        out_specs=spec,
        compiler_params=pltpu.CompilerParams(dimension_semantics=("parallel",)),
    )(q, k, v)
    return out[:, :n, :]


# ----------------------------------------------------------------------------
# Model: parameter init + forward, matching the PyTorch ViT forward pass.
# ----------------------------------------------------------------------------
def init_params(key, *, in_channels, patch_size, emb_size, img_size, layers,
                n_classes, num_heads):
    patch_dim = patch_size ** 2 * in_channels
    n_tok = (img_size // patch_size) ** 2 + 1
    keys = iter(jax.random.split(key, 8 + 8 * layers))

    def lin(kk, fan_in, fan_out):
        w = jax.random.normal(kk, (fan_in, fan_out), jnp.float32) * (fan_in ** -0.5)
        return w, jnp.zeros((fan_out,), jnp.float32)

    params = {"patch_size": patch_size, "emb_size": emb_size,
              "num_heads": num_heads, "n_classes": n_classes}
    params["patch_w"], params["patch_b"] = lin(next(keys), patch_dim, emb_size)
    params["cls"] = jax.random.normal(next(keys), (1, 1, emb_size), jnp.float32)
    params["pos"] = jax.random.normal(next(keys), (n_tok, emb_size), jnp.float32)

    layer_params = []
    for _ in range(layers):
        lp = {"ln1_g": jnp.ones((emb_size,), jnp.float32),
              "ln1_b": jnp.zeros((emb_size,), jnp.float32),
              "ln2_g": jnp.ones((emb_size,), jnp.float32),
              "ln2_b": jnp.zeros((emb_size,), jnp.float32)}
        lp["wq"], lp["bq"] = lin(next(keys), emb_size, emb_size)
        lp["wk"], lp["bk"] = lin(next(keys), emb_size, emb_size)
        lp["wv"], lp["bv"] = lin(next(keys), emb_size, emb_size)
        lp["wo"], lp["bo"] = lin(next(keys), emb_size, emb_size)
        # NOTE: FeedForwardBlock's Linear weights are not created/used — its
        # forward() discards the MLP output, so they never affect the result.
        layer_params.append(lp)
    params["layers"] = layer_params

    params["head_ln_g"] = jnp.ones((emb_size,), jnp.float32)
    params["head_ln_b"] = jnp.zeros((emb_size,), jnp.float32)
    params["head_w"], params["head_b"] = lin(next(keys), emb_size, n_classes)
    return params


def encoder_block(h2d, B, seq, lp, num_heads):
    M, E = h2d.shape
    d = E // num_heads
    # h = x; x = attention_norm(x); x = attention(x); x = dropout(x); x = x + h
    a = pallas_layernorm(h2d, lp["ln1_g"], lp["ln1_b"])
    q = pallas_linear(a, lp["wq"], lp["bq"])
    k = pallas_linear(a, lp["wk"], lp["bk"])
    v = pallas_linear(a, lp["wv"], lp["bv"])

    def split(t):
        return (t.reshape(B, seq, num_heads, d)
                 .transpose(0, 2, 1, 3)
                 .reshape(B * num_heads, seq, d))

    attn = pallas_attention(split(q), split(k), split(v), scaling=d ** -0.5)
    attn = (attn.reshape(B, num_heads, seq, d)
                .transpose(0, 2, 1, 3)
                .reshape(M, E))
    # projection + (eval-mode) dropout + residual, fused in one kernel
    h2d = pallas_linear(attn, lp["wo"], lp["bo"], residual=h2d)
    # h = x; x = mlp_norm(x); x = mlp(x)  [returns its input!]; x = x + h
    # => fused LayerNorm + residual; the dead MLP is skipped entirely.
    h2d = pallas_layernorm(h2d, lp["ln2_g"], lp["ln2_b"], residual=True)
    return h2d


def vit_forward(x, params):
    B, C, H, W = x.shape
    P = params["patch_size"]
    E = params["emb_size"]
    # --- PatchEmbedding (same flat reshape as the PyTorch code) ---
    xp = jnp.transpose(x, (0, 2, 3, 1)).reshape(B, (H // P) * (W // P), P * P * C)
    n_patches = xp.shape[1]
    proj = pallas_linear(xp.reshape(B * n_patches, P * P * C),
                         params["patch_w"], params["patch_b"])
    proj = proj.reshape(B, n_patches, E)
    cls = jnp.broadcast_to(params["cls"], (B, 1, E))
    tok = jnp.concatenate([cls, proj], axis=1) + params["pos"][None]
    seq = n_patches + 1
    h = tok.reshape(B * seq, E)
    # --- TransformerEncoder ---
    for lp in params["layers"]:
        h = encoder_block(h, B, seq, lp, params["num_heads"])
    # --- ClassificationHead: take CLS token, LayerNorm, Linear ---
    cls_tok = h.reshape(B, seq, E)[:, 0]
    cls_ln = pallas_layernorm(cls_tok, params["head_ln_g"], params["head_ln_b"])
    logits = pallas_linear(cls_ln, params["head_w"], params["head_b"])
    return logits.reshape(-1, params["n_classes"])


if __name__ == "__main__":
    # Small shapes consistent with the module.
    B, C, IMG, PATCH = 2, 3, 16, 8
    EMB, LAYERS, NCLS, HEADS = 32, 2, 16, 4

    key = jax.random.PRNGKey(0)
    kx, kp = jax.random.split(key)
    x = jax.random.normal(kx, (B, C, IMG, IMG), dtype=jnp.float32)
    params = init_params(kp, in_channels=C, patch_size=PATCH, emb_size=EMB,
                         img_size=IMG, layers=LAYERS, n_classes=NCLS,
                         num_heads=HEADS)

    logits = vit_forward(x, params)
    logits = jax.block_until_ready(logits)

    assert logits.shape == (B, NCLS), logits.shape
    assert logits.dtype == jnp.float32
    assert bool(jnp.all(jnp.isfinite(logits))), "non-finite logits"

    print("KERNEL_OK")
</pallas_src>

<mosaic_0001>
module attributes {stable_mosaic.version = 11 : i64} {
  func.func @_linear_kernel(%arg0: i32, %arg1: memref<8x192xf32, #tpu.memory_space<vmem>>, %arg2: memref<192x32xf32, #tpu.memory_space<vmem>>, %arg3: memref<1x32xf32, #tpu.memory_space<vmem>>, %arg4: memref<8x32xf32, #tpu.memory_space<vmem>>) attributes {dimension_semantics = [#tpu.dimension_semantics<parallel>], iteration_bounds = array<i64: 1>, scalar_prefetch = 0 : i64, scratch_operands = 0 : i64, tpu.core_type = #tpu.core_type<tc>, window_params = [{transform_indices = @transform_0, window_bounds = array<i64: 8, 192>}, {pipeline_mode = #tpu.pipeline_mode<synchronous>, transform_indices = @transform_1, window_bounds = array<i64: 192, 32>}, {pipeline_mode = #tpu.pipeline_mode<synchronous>, transform_indices = @transform_2, window_bounds = array<i64: 1, 32>}, {transform_indices = @transform_3, window_bounds = array<i64: 8, 32>}]} {
    %c0 = arith.constant 0 : index
    %c0_0 = arith.constant 0 : index
    %0 = vector.load %arg1[%c0, %c0_0] : memref<8x192xf32, #tpu.memory_space<vmem>>, vector<8x192xf32>
    %c0_1 = arith.constant 0 : index
    %c0_2 = arith.constant 0 : index
    %1 = vector.load %arg2[%c0_1, %c0_2] : memref<192x32xf32, #tpu.memory_space<vmem>>, vector<192x32xf32>
    %cst = arith.constant dense<0.000000e+00> : vector<8x32xf32>
    %2 = tpu.matmul %0, %1, %cst {dimension_numbers = #tpu.dot_dimension_numbers<[1], [0], [0], [1], [0, 0, 1, 1], [], []>} : vector<8x192xf32>, vector<192x32xf32>, vector<8x32xf32> -> vector<8x32xf32>
    %c0_3 = arith.constant 0 : index
    %c0_4 = arith.constant 0 : index
    %3 = vector.load %arg3[%c0_3, %c0_4] : memref<1x32xf32, #tpu.memory_space<vmem>>, vector<1x32xf32>
    %4 = vector.broadcast %3 : vector<1x32xf32> to vector<8x32xf32>
    %5 = arith.addf %2, %4 : vector<8x32xf32>
    %c0_5 = arith.constant 0 : index
    %c0_6 = arith.constant 0 : index
    %6 = vector.load %arg4[%c0_5, %c0_6] : memref<8x32xf32, #tpu.memory_space<vmem>>, vector<8x32xf32>
    tpu.vector_store %arg4[%c0_5, %c0_6], %5 {strides = array<i32>} : memref<8x32xf32, #tpu.memory_space<vmem>>, vector<8x32xf32>,
    return
  }
  func.func @transform_0(%arg0: i32) -> (i32, i32) {
    %c0_i32 = arith.constant 0 : i32
    %c0_i32_0 = arith.constant 0 : i32
    return %arg0, %c0_i32 : i32, i32
  }
  func.func @transform_1(%arg0: i32) -> (i32, i32) {
    %c0_i32 = arith.constant 0 : i32
    %c0_i32_0 = arith.constant 0 : i32
    %c0_i32_1 = arith.constant 0 : i32
    return %c0_i32, %c0_i32_0 : i32, i32
  }
  func.func @transform_2(%arg0: i32) -> (i32, i32) {
    %c0_i32 = arith.constant 0 : i32
    %c0_i32_0 = arith.constant 0 : i32
    %c0_i32_1 = arith.constant 0 : i32
    return %c0_i32, %c0_i32_0 : i32, i32
  }
  func.func @transform_3(%arg0: i32) -> (i32, i32) {
    %c0_i32 = arith.constant 0 : i32
    %c0_i32_0 = arith.constant 0 : i32
    return %arg0, %c0_i32 : i32, i32
  }
}

</mosaic_0001>

<llo_original>
// kernel: tpu_custom_call.1
$region0: #{tpu_custom_call.1}
  #allocation0 [shape = 'u32[]', space=smem, size = 0x4, offset = 0x4, fixed_abs, tag = 'smem constant byte address 0x4 - core index']
  #allocation1 [shape = 'u32[72,128]{1,0:T(1,128)}', space=vmem, size = 0x9000, scoped, tag = 'internal scratch']
  %s0 = inlined_call_operand.vmem [shape: f32[8,192], index: 0, kind: input, shape index: {}]
  %s1 = inlined_call_operand.vmem [shape: f32[192,32], index: 1, kind: input, shape index: {}]
  %s2 = inlined_call_operand.vmem [shape: f32[1,32], index: 2, kind: input, shape index: {}]
  %s3 = inlined_call_operand.hbm [shape: f32[8,32], index: 3, kind: output, shape index: {}]
  %s4 = sld [smem:[#allocation0]]
  $region22: #{tpu_custom_call.1} parent=0
    _
  %s6 = ssub.s32 1, %s4
  %s7 = scalar_select 0, %s6, %s4
  $region1: #{tpu_custom_call.1} parent=0
    #allocation2 [shape = 'u8[4096]{0}', space=vmem, size = 0x1000, scoped, tag = 'output window, operand 0, single buffered']
    #allocation3 [shape = 's32[1]{0}', space=sflag, size = 0x4, scoped, tag = 'scoped memory for tpu_custom_call.1']
    %8 = vsyncpa [#allocation3], 0
    // Predicated region
    $region2: #{tpu_custom_call.1} parent=1 // pred_check
      _
    $region3: #{tpu_custom_call.1} parent=1 // pred_check_branch
      %10 = sbr.rel (0) target = $region5
    $region4: #{tpu_custom_call.1} parent=1 // pred_region
      _
    $region5: #{tpu_custom_call.1} parent=1 // pred_fallthru
      _
    // Predicated region
    $region6: #{tpu_custom_call.1} parent=1 // pred_check
      _
    $region7: #{tpu_custom_call.1} parent=1 // pred_check_branch
      %12 = sbr.rel (0) target = $region9
    $region8: #{tpu_custom_call.1} parent=1 // pred_region
      _
    $region9: #{tpu_custom_call.1} parent=1 // pred_fallthru
      _
    // Predicated region
    $region10: #{tpu_custom_call.1} parent=1 // pred_check
      _
    $region11: #{tpu_custom_call.1} parent=1 // pred_check_branch
      %14 = sbr.rel (0) target = $region13
    $region12: #{tpu_custom_call.1} parent=1 // pred_region
      _
    $region13: #{tpu_custom_call.1} parent=1 // pred_fallthru
      _
    %v15 = vld [vmem:[%s0] sm:$0xff]
    %v16 = vld [vmem:[%s0 + $0x8] sm:$0xff]
    %v17 = vld [vmem:[%s1] sm:$0xff]
    %v18 = vld [vmem:[%s1 + $0x8] sm:$0xff]
    %v19 = vld [vmem:[%s1 + $0x10] sm:$0xff]
    %v20 = vld [vmem:[%s1 + $0x18] sm:$0xff]
    %v21 = vld [vmem:[%s1 + $0x20] sm:$0xff]
    %v22 = vld [vmem:[%s1 + $0x28] sm:$0xff]
    %v23 = vld [vmem:[%s1 + $0x30] sm:$0xff]
    %v24 = vld [vmem:[%s1 + $0x38] sm:$0xff]
    %v25 = vld [vmem:[%s1 + $0x40] sm:$0xff]
    %v26 = vld [vmem:[%s1 + $0x48] sm:$0xff]
    %v27 = vld [vmem:[%s1 + $0x50] sm:$0xff]
    %v28 = vld [vmem:[%s1 + $0x58] sm:$0xff]
    %v29 = vld [vmem:[%s1 + $0x60] sm:$0xff]
    %v30 = vld [vmem:[%s1 + $0x68] sm:$0xff]
    %v31 = vld [vmem:[%s1 + $0x70] sm:$0xff]
    %v32 = vld [vmem:[%s1 + $0x78] sm:$0xff]
    %v33 = vld [vmem:[%s1 + $0x80] sm:$0xff]
    %v34 = vld [vmem:[%s1 + $0x88] sm:$0xff]
    %v35 = vld [vmem:[%s1 + $0x90] sm:$0xff]
    %v36 = vld [vmem:[%s1 + $0x98] sm:$0xff]
    %v37 = vld [vmem:[%s1 + $0xa0] sm:$0xff]
    %v38 = vld [vmem:[%s1 + $0xa8] sm:$0xff]
    %v39 = vld [vmem:[%s1 + $0xb0] sm:$0xff]
    %v40 = vld [vmem:[%s1 + $0xb8] sm:$0xff]
    %v41 = vld [vmem:[%s2] sm:$0x1]
    %v43 = vperm.slane %v41, 0
    %vm45 = vcmask 523264
    %v47 = vsel %vm45, %v16, 0
    %49 = vmatpush.msra.mxu0 %v32
    %50 = vmatpush.msra.mxu0 %v31
    %51 = vmatpush.msra.mxu0 %v30
    %52 = vmatpush.msra.mxu0 %v29
    %53 = vmatpush.msra.mxu0 %v28
    %54 = vmatpush.msra.mxu0 %v27
    %55 = vmatpush.msra.mxu0 %v26
    %56 = vmatpush.msra.mxu0 %v25
    %57 = vmatpush.msra.mxu0 %v24
    %58 = vmatpush.msra.mxu0 %v23
    %59 = vmatpush.msra.mxu0 %v22
    %60 = vmatpush.msra.mxu0 %v21
    %61 = vmatpush.msra.mxu0 %v20
    %62 = vmatpush.msra.mxu0 %v19
    %63 = vmatpush.msra.mxu0 %v18
    %64 = vmatpush.msra.mxu0 %v17
    %65 = vmatmul.f32.gmra.mxu0 %v15
    %v66 = vpop.f32.mrf.mxu0
    %v67 = vadd.f32 %v43, %v66
    %68 = vdwg.mxu0
    %69 = vmatpush.msra.mxu0 0.0
    %70 = vmatpush.msra.mxu0 0.0
    %71 = vmatpush.msra.mxu0 0.0
    %72 = vmatpush.msra.mxu0 0.0
    %73 = vmatpush.msra.mxu0 0.0
    %74 = vmatpush.msra.mxu0 0.0
    %75 = vmatpush.msra.mxu0 0.0
    %76 = vmatpush.msra.mxu0 0.0
    %77 = vmatpush.msra.mxu0 %v40
    %78 = vmatpush.msra.mxu0 %v39
    %79 = vmatpush.msra.mxu0 %v38
    %80 = vmatpush.msra.mxu0 %v37
    %81 = vmatpush.msra.mxu0 %v36
    %82 = vmatpush.msra.mxu0 %v35
    %83 = vmatpush.msra.mxu0 %v34
    %84 = vmatpush.msra.mxu0 %v33
    %85 = vmatmul.f32.gmra.mxu0 %v47
    %v86 = vpop.f32.mrf.mxu0
    %v87 = vadd.f32 %v67, %v86
    %88 = vdwg.mxu0
    %vm89 = vcmask 261120
    %90 = vst.msk [vmem:[#allocation2] sm:$0xff] %vm89, %v87
    // Predicated region
    $region14: #{tpu_custom_call.1} parent=1 // pred_check
      _
    $region15: #{tpu_custom_call.1} parent=1 // pred_check_branch
      %92 = sbr.rel (0) target = $region17
    $region16: #{tpu_custom_call.1} parent=1 // pred_region
      %94 = vsyncadd [#allocation3], 0
      %s96 = sshll.u32 [#allocation2], 4
      %s97 = int_to_ptr.vmem [resolvable:$true] %s96
      %s98 = sshll.u32 %s3, 4
      %s99 = int_to_ptr.hbm [resolvable:$true] %s98
      %101 = dma.vmem_to_hbm [thread:$0]  %s97, 128, %s99, [#allocation3]
    $region17: #{tpu_custom_call.1} parent=1 // pred_fallthru
      _
    // Predicated region
    $region18: #{tpu_custom_call.1} parent=1 // pred_check
      _
    $region19: #{tpu_custom_call.1} parent=1 // pred_check_branch
      %103 = sbr.rel (0) target = $region21
    $region20: #{tpu_custom_call.1} parent=1 // pred_region
      %105 = dma.done [#allocation3], 128
    $region21: #{tpu_custom_call.1} parent=1 // pred_fallthru
      _
    %106 = vsyncpa [#allocation3], 1

</llo_original>
